<compile_context>
chip_gen: v7x
topology: tpu7x:2x2x1
jax: 0.10.0
libtpu: 0.0.40
codegen_flags: <defaults>
</compile_context>

<pallas_src>
import functools
import math

import jax
import jax.numpy as jnp
import numpy as np
from jax.experimental import pallas as pl
from jax.experimental.pallas import tpu as pltpu


def _self_attention_kernel(x_ref, wq_ref, wk_ref, wv_ref, bq_ref, bk_ref, bv_ref,
                           mask_ref, out_ref, *, num_heads, head_dim):
    # x_ref:    (1, S, H)  bf16 hidden states for this batch element
    # w*_ref:   (H, H)     bf16 transposed projection weights (VMEM-resident)
    # b*_ref:   (1, H)     f32 biases (scale folded into bq)
    # mask_ref: (1, 1, S)  f32 additive attention mask for this batch element
    # out_ref:  (1, S, H)  f32 context, heads concatenated along the last axis
    x = x_ref[0]                                                               # (S, H) bf16

    # Full-width projections: MXU output width = H, f32 accumulation, f32 bias add.
    q = jnp.dot(x, wq_ref[...], preferred_element_type=jnp.float32) + bq_ref[...]  # (S, H)
    k = jnp.dot(x, wk_ref[...], preferred_element_type=jnp.float32) + bk_ref[...]
    v = jnp.dot(x, wv_ref[...], preferred_element_type=jnp.float32) + bv_ref[...]

    mask = mask_ref[0]                                                         # (1, S) f32

    q16 = q.astype(jnp.bfloat16)
    k16 = k.astype(jnp.bfloat16)
    v16 = v.astype(jnp.bfloat16)

    ctx_heads = []
    for h in range(num_heads):                       # static unroll; nh is small
        sl = slice(h * head_dim, (h + 1) * head_dim)
        qh, kh, vh = q16[:, sl], k16[:, sl], v16[:, sl]                        # (S, hd)

        # scores = q_h @ k_h^T (contract head dim; 1/sqrt(hd) already folded in)
        scores = jax.lax.dot_general(qh, kh, (((1,), (1,)), ((), ())),
                                     preferred_element_type=jnp.float32)      # (S, S)
        scores = scores + mask

        m = jnp.max(scores, axis=-1, keepdims=True)
        e = jnp.exp(scores - m)                                                # f32
        denom = jnp.sum(e, axis=-1, keepdims=True)
        # TODO(synk): training-mode dropout on attention probs would go here.

        # Deferred normalization: (S,S)@(S,hd) in bf16, then cheap (S,hd) rescale.
        ctx = jnp.dot(e.astype(jnp.bfloat16), vh,
                      preferred_element_type=jnp.float32)                      # (S, hd)
        ctx = ctx * pl.reciprocal(denom, approx=True)
        ctx_heads.append(ctx)

    # Heads concatenated along the last axis == torch permute(0,2,1,3).view(B,S,H).
    out_ref[0] = jnp.concatenate(ctx_heads, axis=-1).astype(out_ref.dtype)     # (S, H)


def self_attention_forward(hidden_states, attention_mask, wq, bq, wk, bk, wv, bv,
                           *, num_attention_heads):
    """hidden_states: (B, S, H); attention_mask: additive, broadcastable (B,1,1,S);
    wq/wk/wv: (H, H) nn.Linear weights (out, in); bq/bk/bv: (H,)."""
    B, S, H = hidden_states.shape
    nh = num_attention_heads
    assert H % nh == 0, "hidden size must be a multiple of num_attention_heads"
    hd = H // nh
    scale = 1.0 / math.sqrt(hd)

    # nn.Linear computes y = x @ W.T + b with W of shape (out, in).
    # Pre-transpose; fold the 1/sqrt(hd) scale into the query weight + bias.
    wq_t = (jnp.transpose(wq).astype(jnp.float32) * scale).astype(jnp.bfloat16)
    wk_t = jnp.transpose(wk).astype(jnp.bfloat16)
    wv_t = jnp.transpose(wv).astype(jnp.bfloat16)
    bq_r = (bq.astype(jnp.float32) * scale).reshape(1, H)
    bk_r = bk.astype(jnp.float32).reshape(1, H)
    bv_r = bv.astype(jnp.float32).reshape(1, H)
    mask = attention_mask.reshape(B, 1, S).astype(jnp.float32)
    x = hidden_states.astype(jnp.bfloat16)

    flops = B * (3 * 2 * S * H * H) + B * nh * (2 * 2 * S * S * hd)
    bytes_accessed = (2 * (B * S * H + 3 * H * H)            # bf16 x + weights
                      + 4 * (3 * H + B * S + B * S * H))     # f32 biases + mask + out
    cost = pl.CostEstimate(flops=flops,
                           transcendentals=B * nh * (S * S + S),
                           bytes_accessed=bytes_accessed)

    out = pl.pallas_call(
        functools.partial(_self_attention_kernel, num_heads=nh, head_dim=hd),
        out_shape=jax.ShapeDtypeStruct((B, S, H), jnp.float32),
        grid_spec=pltpu.PrefetchScalarGridSpec(
            num_scalar_prefetch=0,
            grid=(B,),
            in_specs=[
                pl.BlockSpec((1, S, H), lambda b: (b, 0, 0)),   # hidden states (per batch)
                pl.BlockSpec((H, H), lambda b: (0, 0)),         # Wq^T (VMEM-resident)
                pl.BlockSpec((H, H), lambda b: (0, 0)),         # Wk^T
                pl.BlockSpec((H, H), lambda b: (0, 0)),         # Wv^T
                pl.BlockSpec((1, H), lambda b: (0, 0)),         # bq (scaled)
                pl.BlockSpec((1, H), lambda b: (0, 0)),         # bk
                pl.BlockSpec((1, H), lambda b: (0, 0)),         # bv
                pl.BlockSpec((1, 1, S), lambda b: (b, 0, 0)),   # additive mask (per batch)
            ],
            out_specs=pl.BlockSpec((1, S, H), lambda b: (b, 0, 0)),
        ),
        compiler_params=pltpu.CompilerParams(
            dimension_semantics=("parallel",),
            vmem_limit_bytes=32 * 1024 * 1024),
        cost_estimate=cost,
    )(x, wq_t, wk_t, wv_t, bq_r, bk_r, bv_r, mask)

    return out


def _reference(hidden_states, attention_mask, wq, bq, wk, bk, wv, bv, nh):
    B, S, H = hidden_states.shape
    hd = H // nh
    q = hidden_states @ wq.T + bq
    k = hidden_states @ wk.T + bk
    v = hidden_states @ wv.T + bv

    def split(t):
        return jnp.transpose(t.reshape(B, S, nh, hd), (0, 2, 1, 3))

    q, k, v = split(q), split(k), split(v)
    scores = jnp.einsum('bhqd,bhkd->bhqk', q, k) / math.sqrt(hd)
    scores = scores + attention_mask                      # (B,1,1,S) broadcast
    probs = jax.nn.softmax(scores, axis=-1)
    ctx = jnp.einsum('bhqk,bhkd->bhqd', probs, v)
    return jnp.transpose(ctx, (0, 2, 1, 3)).reshape(B, S, H)


if __name__ == "__main__":
    hidden_size = 32
    num_heads = 4
    B, S = 2, 8

    key = jax.random.PRNGKey(0)
    kx, kq, kk, kv, kbq, kbk, kbv = jax.random.split(key, 7)

    hidden_states = jax.random.normal(kx, (B, S, hidden_size), dtype=jnp.float32)
    bound = 1.0 / math.sqrt(hidden_size)
    wq = jax.random.uniform(kq, (hidden_size, hidden_size), jnp.float32, -bound, bound)
    wk = jax.random.uniform(kk, (hidden_size, hidden_size), jnp.float32, -bound, bound)
    wv = jax.random.uniform(kv, (hidden_size, hidden_size), jnp.float32, -bound, bound)
    bq = jax.random.uniform(kbq, (hidden_size,), jnp.float32, -bound, bound)
    bk = jax.random.uniform(kbk, (hidden_size,), jnp.float32, -bound, bound)
    bv = jax.random.uniform(kbv, (hidden_size,), jnp.float32, -bound, bound)

    # BERT-style additive mask: 0 where attendable, -10000 on padded positions
    # (last two positions of the second batch element are padding).
    pad = jnp.array([[0, 0, 0, 0, 0, 0, 0, 0],
                     [0, 0, 0, 0, 0, 0, 1, 1]], dtype=jnp.float32)       # (B, S)
    attention_mask = (pad * -10000.0).reshape(B, 1, 1, S)

    out = self_attention_forward(hidden_states, attention_mask,
                                 wq, bq, wk, bk, wv, bv,
                                 num_attention_heads=num_heads)
    out = jax.block_until_ready(out)

    ref = _reference(hidden_states, attention_mask, wq, bq, wk, bk, wv, bv, num_heads)
    # Kernel runs its matmuls with bf16 operands (f32 accumulation), so tolerances
    # are looser than a pure-f32 comparison would allow.
    np.testing.assert_allclose(np.asarray(out), np.asarray(ref), rtol=2e-2, atol=2e-2)

    print("KERNEL_OK")
</pallas_src>

<mosaic_0001>
module attributes {stable_mosaic.version = 11 : i64} {
  func.func @_self_attention_kernel(%arg0: i32, %arg1: memref<1x8x32xbf16, #tpu.memory_space<vmem>>, %arg2: memref<32x32xbf16, #tpu.memory_space<vmem>>, %arg3: memref<32x32xbf16, #tpu.memory_space<vmem>>, %arg4: memref<32x32xbf16, #tpu.memory_space<vmem>>, %arg5: memref<1x32xf32, #tpu.memory_space<vmem>>, %arg6: memref<1x32xf32, #tpu.memory_space<vmem>>, %arg7: memref<1x32xf32, #tpu.memory_space<vmem>>, %arg8: memref<1x1x8xf32, #tpu.memory_space<vmem>>, %arg9: memref<1x8x32xf32, #tpu.memory_space<vmem>>) attributes {dimension_semantics = [#tpu.dimension_semantics<parallel>], iteration_bounds = array<i64: 2>, scalar_prefetch = 0 : i64, scratch_operands = 0 : i64, tpu.core_type = #tpu.core_type<tc>, window_params = [{transform_indices = @transform_0, window_bounds = array<i64: 1, 8, 32>}, {pipeline_mode = #tpu.pipeline_mode<synchronous>, transform_indices = @transform_1, window_bounds = array<i64: 32, 32>}, {pipeline_mode = #tpu.pipeline_mode<synchronous>, transform_indices = @transform_2, window_bounds = array<i64: 32, 32>}, {pipeline_mode = #tpu.pipeline_mode<synchronous>, transform_indices = @transform_3, window_bounds = array<i64: 32, 32>}, {pipeline_mode = #tpu.pipeline_mode<synchronous>, transform_indices = @transform_4, window_bounds = array<i64: 1, 32>}, {pipeline_mode = #tpu.pipeline_mode<synchronous>, transform_indices = @transform_5, window_bounds = array<i64: 1, 32>}, {pipeline_mode = #tpu.pipeline_mode<synchronous>, transform_indices = @transform_6, window_bounds = array<i64: 1, 32>}, {transform_indices = @transform_7, window_bounds = array<i64: 1, 1, 8>}, {transform_indices = @transform_8, window_bounds = array<i64: 1, 8, 32>}]} {
    %c0 = arith.constant 0 : index
    %c0_0 = arith.constant 0 : index
    %c0_1 = arith.constant 0 : index
    %0 = vector.load %arg1[%c0, %c0_0, %c0_1] : memref<1x8x32xbf16, #tpu.memory_space<vmem>>, vector<1x8x32xbf16>
    %1 = vector.shape_cast %0 : vector<1x8x32xbf16> to vector<8x32xbf16>
    %c0_2 = arith.constant 0 : index
    %c0_3 = arith.constant 0 : index
    %2 = vector.load %arg2[%c0_2, %c0_3] : memref<32x32xbf16, #tpu.memory_space<vmem>>, vector<32x32xbf16>
    %cst = arith.constant dense<0.000000e+00> : vector<8x32xf32>
    %3 = tpu.matmul %1, %2, %cst {dimension_numbers = #tpu.dot_dimension_numbers<[1], [0], [0], [1], [0, 0, 1, 1], [], []>} : vector<8x32xbf16>, vector<32x32xbf16>, vector<8x32xf32> -> vector<8x32xf32>
    %c0_4 = arith.constant 0 : index
    %c0_5 = arith.constant 0 : index
    %4 = vector.load %arg5[%c0_4, %c0_5] : memref<1x32xf32, #tpu.memory_space<vmem>>, vector<1x32xf32>
    %5 = vector.broadcast %4 : vector<1x32xf32> to vector<8x32xf32>
    %6 = arith.addf %3, %5 : vector<8x32xf32>
    %c0_6 = arith.constant 0 : index
    %c0_7 = arith.constant 0 : index
    %7 = vector.load %arg3[%c0_6, %c0_7] : memref<32x32xbf16, #tpu.memory_space<vmem>>, vector<32x32xbf16>
    %cst_8 = arith.constant dense<0.000000e+00> : vector<8x32xf32>
    %8 = tpu.matmul %1, %7, %cst_8 {dimension_numbers = #tpu.dot_dimension_numbers<[1], [0], [0], [1], [0, 0, 1, 1], [], []>} : vector<8x32xbf16>, vector<32x32xbf16>, vector<8x32xf32> -> vector<8x32xf32>
    %c0_9 = arith.constant 0 : index
    %c0_10 = arith.constant 0 : index
    %9 = vector.load %arg6[%c0_9, %c0_10] : memref<1x32xf32, #tpu.memory_space<vmem>>, vector<1x32xf32>
    %10 = vector.broadcast %9 : vector<1x32xf32> to vector<8x32xf32>
    %11 = arith.addf %8, %10 : vector<8x32xf32>
    %c0_11 = arith.constant 0 : index
    %c0_12 = arith.constant 0 : index
    %12 = vector.load %arg4[%c0_11, %c0_12] : memref<32x32xbf16, #tpu.memory_space<vmem>>, vector<32x32xbf16>
    %cst_13 = arith.constant dense<0.000000e+00> : vector<8x32xf32>
    %13 = tpu.matmul %1, %12, %cst_13 {dimension_numbers = #tpu.dot_dimension_numbers<[1], [0], [0], [1], [0, 0, 1, 1], [], []>} : vector<8x32xbf16>, vector<32x32xbf16>, vector<8x32xf32> -> vector<8x32xf32>
    %c0_14 = arith.constant 0 : index
    %c0_15 = arith.constant 0 : index
    %14 = vector.load %arg7[%c0_14, %c0_15] : memref<1x32xf32, #tpu.memory_space<vmem>>, vector<1x32xf32>
    %15 = vector.broadcast %14 : vector<1x32xf32> to vector<8x32xf32>
    %16 = arith.addf %13, %15 : vector<8x32xf32>
    %c0_16 = arith.constant 0 : index
    %c0_17 = arith.constant 0 : index
    %c0_18 = arith.constant 0 : index
    %17 = vector.load %arg8[%c0_16, %c0_17, %c0_18] : memref<1x1x8xf32, #tpu.memory_space<vmem>>, vector<1x1x8xf32>
    %18 = vector.shape_cast %17 : vector<1x1x8xf32> to vector<1x8xf32>
    %19 = arith.truncf %6 : vector<8x32xf32> to vector<8x32xbf16>
    %20 = arith.truncf %11 : vector<8x32xf32> to vector<8x32xbf16>
    %21 = arith.truncf %16 : vector<8x32xf32> to vector<8x32xbf16>
    %22 = vector.extract_strided_slice %19 {offsets = [0, 0], sizes = [8, 8], strides = [1, 1]} : vector<8x32xbf16> to vector<8x8xbf16>
    %23 = vector.extract_strided_slice %20 {offsets = [0, 0], sizes = [8, 8], strides = [1, 1]} : vector<8x32xbf16> to vector<8x8xbf16>
    %24 = vector.extract_strided_slice %21 {offsets = [0, 0], sizes = [8, 8], strides = [1, 1]} : vector<8x32xbf16> to vector<8x8xbf16>
    %cst_19 = arith.constant dense<0.000000e+00> : vector<8x8xf32>
    %25 = tpu.matmul %22, %23, %cst_19 {dimension_numbers = #tpu.dot_dimension_numbers<[1], [1], [0], [0], [0, 0, 1, 0], [], []>} : vector<8x8xbf16>, vector<8x8xbf16>, vector<8x8xf32> -> vector<8x8xf32>
    %26 = vector.broadcast %18 : vector<1x8xf32> to vector<8x8xf32>
    %27 = arith.addf %25, %26 : vector<8x8xf32>
    %cst_20 = arith.constant dense<0xFF800000> : vector<8xf32>
    %28 = vector.multi_reduction <maximumf>, %27, %cst_20 [1] : vector<8x8xf32> to vector<8xf32>
    %29 = vector.shape_cast %28 : vector<8xf32> to vector<8x1xf32>
    %30 = vector.broadcast %29 : vector<8x1xf32> to vector<8x8xf32>
    %31 = arith.subf %27, %30 : vector<8x8xf32>
    %32 = math.exp %31 : vector<8x8xf32>
    %cst_21 = arith.constant dense<0.000000e+00> : vector<8xf32>
    %33 = vector.multi_reduction <add>, %32, %cst_21 [1] : vector<8x8xf32> to vector<8xf32>
    %34 = vector.shape_cast %33 : vector<8xf32> to vector<8x1xf32>
    %35 = arith.truncf %32 : vector<8x8xf32> to vector<8x8xbf16>
    %cst_22 = arith.constant dense<0.000000e+00> : vector<8x8xf32>
    %36 = tpu.matmul %35, %24, %cst_22 {dimension_numbers = #tpu.dot_dimension_numbers<[1], [0], [0], [1], [0, 0, 1, 1], [], []>} : vector<8x8xbf16>, vector<8x8xbf16>, vector<8x8xf32> -> vector<8x8xf32>
    %37 = tpu.reciprocal %34 {approx = true} : vector<8x1xf32> -> vector<8x1xf32>
    %38 = vector.broadcast %37 : vector<8x1xf32> to vector<8x8xf32>
    %39 = arith.mulf %36, %38 : vector<8x8xf32>
    %40 = vector.extract_strided_slice %19 {offsets = [0, 8], sizes = [8, 8], strides = [1, 1]} : vector<8x32xbf16> to vector<8x8xbf16>
    %41 = vector.extract_strided_slice %20 {offsets = [0, 8], sizes = [8, 8], strides = [1, 1]} : vector<8x32xbf16> to vector<8x8xbf16>
    %42 = vector.extract_strided_slice %21 {offsets = [0, 8], sizes = [8, 8], strides = [1, 1]} : vector<8x32xbf16> to vector<8x8xbf16>
    %cst_23 = arith.constant dense<0.000000e+00> : vector<8x8xf32>
    %43 = tpu.matmul %40, %41, %cst_23 {dimension_numbers = #tpu.dot_dimension_numbers<[1], [1], [0], [0], [0, 0, 1, 0], [], []>} : vector<8x8xbf16>, vector<8x8xbf16>, vector<8x8xf32> -> vector<8x8xf32>
    %44 = vector.broadcast %18 : vector<1x8xf32> to vector<8x8xf32>
    %45 = arith.addf %43, %44 : vector<8x8xf32>
    %cst_24 = arith.constant dense<0xFF800000> : vector<8xf32>
    %46 = vector.multi_reduction <maximumf>, %45, %cst_24 [1] : vector<8x8xf32> to vector<8xf32>
    %47 = vector.shape_cast %46 : vector<8xf32> to vector<8x1xf32>
    %48 = vector.broadcast %47 : vector<8x1xf32> to vector<8x8xf32>
    %49 = arith.subf %45, %48 : vector<8x8xf32>
    %50 = math.exp %49 : vector<8x8xf32>
    %cst_25 = arith.constant dense<0.000000e+00> : vector<8xf32>
    %51 = vector.multi_reduction <add>, %50, %cst_25 [1] : vector<8x8xf32> to vector<8xf32>
    %52 = vector.shape_cast %51 : vector<8xf32> to vector<8x1xf32>
    %53 = arith.truncf %50 : vector<8x8xf32> to vector<8x8xbf16>
    %cst_26 = arith.constant dense<0.000000e+00> : vector<8x8xf32>
    %54 = tpu.matmul %53, %42, %cst_26 {dimension_numbers = #tpu.dot_dimension_numbers<[1], [0], [0], [1], [0, 0, 1, 1], [], []>} : vector<8x8xbf16>, vector<8x8xbf16>, vector<8x8xf32> -> vector<8x8xf32>
    %55 = tpu.reciprocal %52 {approx = true} : vector<8x1xf32> -> vector<8x1xf32>
    %56 = vector.broadcast %55 : vector<8x1xf32> to vector<8x8xf32>
    %57 = arith.mulf %54, %56 : vector<8x8xf32>
    %58 = vector.extract_strided_slice %19 {offsets = [0, 16], sizes = [8, 8], strides = [1, 1]} : vector<8x32xbf16> to vector<8x8xbf16>
    %59 = vector.extract_strided_slice %20 {offsets = [0, 16], sizes = [8, 8], strides = [1, 1]} : vector<8x32xbf16> to vector<8x8xbf16>
    %60 = vector.extract_strided_slice %21 {offsets = [0, 16], sizes = [8, 8], strides = [1, 1]} : vector<8x32xbf16> to vector<8x8xbf16>
    %cst_27 = arith.constant dense<0.000000e+00> : vector<8x8xf32>
    %61 = tpu.matmul %58, %59, %cst_27 {dimension_numbers = #tpu.dot_dimension_numbers<[1], [1], [0], [0], [0, 0, 1, 0], [], []>} : vector<8x8xbf16>, vector<8x8xbf16>, vector<8x8xf32> -> vector<8x8xf32>
    %62 = vector.broadcast %18 : vector<1x8xf32> to vector<8x8xf32>
    %63 = arith.addf %61, %62 : vector<8x8xf32>
    %cst_28 = arith.constant dense<0xFF800000> : vector<8xf32>
    %64 = vector.multi_reduction <maximumf>, %63, %cst_28 [1] : vector<8x8xf32> to vector<8xf32>
    %65 = vector.shape_cast %64 : vector<8xf32> to vector<8x1xf32>
    %66 = vector.broadcast %65 : vector<8x1xf32> to vector<8x8xf32>
    %67 = arith.subf %63, %66 : vector<8x8xf32>
    %68 = math.exp %67 : vector<8x8xf32>
    %cst_29 = arith.constant dense<0.000000e+00> : vector<8xf32>
    %69 = vector.multi_reduction <add>, %68, %cst_29 [1] : vector<8x8xf32> to vector<8xf32>
    %70 = vector.shape_cast %69 : vector<8xf32> to vector<8x1xf32>
    %71 = arith.truncf %68 : vector<8x8xf32> to vector<8x8xbf16>
    %cst_30 = arith.constant dense<0.000000e+00> : vector<8x8xf32>
    %72 = tpu.matmul %71, %60, %cst_30 {dimension_numbers = #tpu.dot_dimension_numbers<[1], [0], [0], [1], [0, 0, 1, 1], [], []>} : vector<8x8xbf16>, vector<8x8xbf16>, vector<8x8xf32> -> vector<8x8xf32>
    %73 = tpu.reciprocal %70 {approx = true} : vector<8x1xf32> -> vector<8x1xf32>
    %74 = vector.broadcast %73 : vector<8x1xf32> to vector<8x8xf32>
    %75 = arith.mulf %72, %74 : vector<8x8xf32>
    %76 = vector.extract_strided_slice %19 {offsets = [0, 24], sizes = [8, 8], strides = [1, 1]} : vector<8x32xbf16> to vector<8x8xbf16>
    %77 = vector.extract_strided_slice %20 {offsets = [0, 24], sizes = [8, 8], strides = [1, 1]} : vector<8x32xbf16> to vector<8x8xbf16>
    %78 = vector.extract_strided_slice %21 {offsets = [0, 24], sizes = [8, 8], strides = [1, 1]} : vector<8x32xbf16> to vector<8x8xbf16>
    %cst_31 = arith.constant dense<0.000000e+00> : vector<8x8xf32>
    %79 = tpu.matmul %76, %77, %cst_31 {dimension_numbers = #tpu.dot_dimension_numbers<[1], [1], [0], [0], [0, 0, 1, 0], [], []>} : vector<8x8xbf16>, vector<8x8xbf16>, vector<8x8xf32> -> vector<8x8xf32>
    %80 = vector.broadcast %18 : vector<1x8xf32> to vector<8x8xf32>
    %81 = arith.addf %79, %80 : vector<8x8xf32>
    %cst_32 = arith.constant dense<0xFF800000> : vector<8xf32>
    %82 = vector.multi_reduction <maximumf>, %81, %cst_32 [1] : vector<8x8xf32> to vector<8xf32>
    %83 = vector.shape_cast %82 : vector<8xf32> to vector<8x1xf32>
    %84 = vector.broadcast %83 : vector<8x1xf32> to vector<8x8xf32>
    %85 = arith.subf %81, %84 : vector<8x8xf32>
    %86 = math.exp %85 : vector<8x8xf32>
    %cst_33 = arith.constant dense<0.000000e+00> : vector<8xf32>
    %87 = vector.multi_reduction <add>, %86, %cst_33 [1] : vector<8x8xf32> to vector<8xf32>
    %88 = vector.shape_cast %87 : vector<8xf32> to vector<8x1xf32>
    %89 = arith.truncf %86 : vector<8x8xf32> to vector<8x8xbf16>
    %cst_34 = arith.constant dense<0.000000e+00> : vector<8x8xf32>
    %90 = tpu.matmul %89, %78, %cst_34 {dimension_numbers = #tpu.dot_dimension_numbers<[1], [0], [0], [1], [0, 0, 1, 1], [], []>} : vector<8x8xbf16>, vector<8x8xbf16>, vector<8x8xf32> -> vector<8x8xf32>
    %91 = tpu.reciprocal %88 {approx = true} : vector<8x1xf32> -> vector<8x1xf32>
    %92 = vector.broadcast %91 : vector<8x1xf32> to vector<8x8xf32>
    %93 = arith.mulf %90, %92 : vector<8x8xf32>
    %94 = tpu.concatenate %39, %57, %75, %93 in 1 : vector<8x8xf32>, vector<8x8xf32>, vector<8x8xf32>, vector<8x8xf32> -> vector<8x32xf32>
    %c0_35 = arith.constant 0 : index
    %c0_36 = arith.constant 0 : index
    %c0_37 = arith.constant 0 : index
    %95 = vector.load %arg9[%c0_35, %c0_36, %c0_37] : memref<1x8x32xf32, #tpu.memory_space<vmem>>, vector<1x8x32xf32>
    %96 = vector.shape_cast %95 : vector<1x8x32xf32> to vector<8x32xf32>
    %97 = vector.shape_cast %94 : vector<8x32xf32> to vector<1x8x32xf32>
    tpu.vector_store %arg9[%c0_35, %c0_36, %c0_37], %97 {strides = array<i32>} : memref<1x8x32xf32, #tpu.memory_space<vmem>>, vector<1x8x32xf32>,
    return
  }
  func.func @transform_0(%arg0: i32) -> (i32, i32, i32) {
    %c0_i32 = arith.constant 0 : i32
    %c0_i32_0 = arith.constant 0 : i32
    %c0_i32_1 = arith.constant 0 : i32
    return %arg0, %c0_i32, %c0_i32_0 : i32, i32, i32
  }
  func.func @transform_1(%arg0: i32) -> (i32, i32) {
    %c0_i32 = arith.constant 0 : i32
    %c0_i32_0 = arith.constant 0 : i32
    %c0_i32_1 = arith.constant 0 : i32
    return %c0_i32, %c0_i32_0 : i32, i32
  }
  func.func @transform_2(%arg0: i32) -> (i32, i32) {
    %c0_i32 = arith.constant 0 : i32
    %c0_i32_0 = arith.constant 0 : i32
    %c0_i32_1 = arith.constant 0 : i32
    return %c0_i32, %c0_i32_0 : i32, i32
  }
  func.func @transform_3(%arg0: i32) -> (i32, i32) {
    %c0_i32 = arith.constant 0 : i32
    %c0_i32_0 = arith.constant 0 : i32
    %c0_i32_1 = arith.constant 0 : i32
    return %c0_i32, %c0_i32_0 : i32, i32
  }
  func.func @transform_4(%arg0: i32) -> (i32, i32) {
    %c0_i32 = arith.constant 0 : i32
    %c0_i32_0 = arith.constant 0 : i32
    %c0_i32_1 = arith.constant 0 : i32
    return %c0_i32, %c0_i32_0 : i32, i32
  }
  func.func @transform_5(%arg0: i32) -> (i32, i32) {
    %c0_i32 = arith.constant 0 : i32
    %c0_i32_0 = arith.constant 0 : i32
    %c0_i32_1 = arith.constant 0 : i32
    return %c0_i32, %c0_i32_0 : i32, i32
  }
  func.func @transform_6(%arg0: i32) -> (i32, i32) {
    %c0_i32 = arith.constant 0 : i32
    %c0_i32_0 = arith.constant 0 : i32
    %c0_i32_1 = arith.constant 0 : i32
    return %c0_i32, %c0_i32_0 : i32, i32
  }
  func.func @transform_7(%arg0: i32) -> (i32, i32, i32) {
    %c0_i32 = arith.constant 0 : i32
    %c0_i32_0 = arith.constant 0 : i32
    %c0_i32_1 = arith.constant 0 : i32
    return %arg0, %c0_i32, %c0_i32_0 : i32, i32, i32
  }
  func.func @transform_8(%arg0: i32) -> (i32, i32, i32) {
    %c0_i32 = arith.constant 0 : i32
    %c0_i32_0 = arith.constant 0 : i32
    %c0_i32_1 = arith.constant 0 : i32
    return %arg0, %c0_i32, %c0_i32_0 : i32, i32, i32
  }
}

</mosaic_0001>

<llo_original>
// kernel: tpu_custom_call.1
$region0: #{tpu_custom_call.1}
  #allocation0 [shape = 'u32[]', space=smem, size = 0x4, offset = 0x4, fixed_abs, tag = 'smem constant byte address 0x4 - core index']
  #allocation1 [shape = 'u32[144,128]{1,0:T(1,128)}', space=vmem, size = 0x12000, scoped, tag = 'internal scratch']
  %s0 = inlined_call_operand.hbm [shape: bf16[2,8,32], index: 0, kind: input, shape index: {}]
  %s1 = inlined_call_operand.hbm [shape: bf16[32,32], index: 1, kind: input, shape index: {}]
  %s2 = inlined_call_operand.hbm [shape: bf16[32,32], index: 2, kind: input, shape index: {}]
  %s3 = inlined_call_operand.hbm [shape: bf16[32,32], index: 3, kind: input, shape index: {}]
  %s4 = inlined_call_operand.vmem [shape: f32[1,32], index: 4, kind: input, shape index: {}]
  %s5 = inlined_call_operand.vmem [shape: f32[1,32], index: 5, kind: input, shape index: {}]
  %s6 = inlined_call_operand.vmem [shape: f32[1,32], index: 6, kind: input, shape index: {}]
  %s7 = inlined_call_operand.vmem [shape: f32[2,1,8], index: 7, kind: input, shape index: {}]
  %s8 = inlined_call_operand.hbm [shape: f32[2,8,32], index: 8, kind: output, shape index: {}]
  %s9 = sld [smem:[#allocation0]]
  $region81: #{tpu_custom_call.1} parent=0
    _
  %s11 = ssub.s32 1, %s9
  %s12 = scalar_select 0, %s11, %s9
  $region1: #{tpu_custom_call.1} parent=0
    #allocation2 [shape = 'u8[4096]{0}', space=vmem, size = 0x1000, scoped, tag = 'input window, operand 0']
    #allocation3 [shape = 's32[2]{0}', space=sflag, size = 0x8, scoped, tag = 'scoped memory for tpu_custom_call.1']
    #allocation4 [shape = 's32[2]{0}', space=sflag, size = 0x8, scoped, tag = 'scoped memory for tpu_custom_call.1']
    #allocation5 [shape = 'u8[8192]{0}', space=vmem, size = 0x2000, scoped, tag = 'input window, operand 1, single buffered']
    #allocation6 [shape = 's32[1]{0}', space=sflag, size = 0x4, scoped, tag = 'scoped memory for tpu_custom_call.1']
    #allocation7 [shape = 'u8[8192]{0}', space=vmem, size = 0x2000, scoped, tag = 'input window, operand 2, single buffered']
    #allocation8 [shape = 'u8[8192]{0}', space=vmem, size = 0x2000, scoped, tag = 'input window, operand 3, single buffered']
    #allocation9 [shape = 's32[1]{0}', space=sflag, size = 0x4, scoped, tag = 'scoped memory for tpu_custom_call.1']
    #allocation10 [shape = 'u8[8192]{0}', space=vmem, size = 0x2000, scoped, tag = 'output window, operand 0']
    %13 = vsyncpa [#allocation3], 0
    %s14 = scalar_lea.sflag [#allocation3], 1
    %15 = vsyncpa %s14, 0
    %16 = vsyncpa [#allocation6], 0
    %17 = vsyncpa [#allocation9], 0
    %18 = vsyncpa [#allocation4], 0
    %s19 = scalar_lea.sflag [#allocation4], 1
    %20 = vsyncpa %s19, 0
    loop: start=0, step=1, limit=4
    $region2: #{tpu_custom_call.1} parent=1 // loop_pre_header
      _
    $region3: #{tpu_custom_call.1} parent=1 // loop_header
      %s22 = sphi 0, %s26
      %p23 = scmp.ge.s32.totalorder %s22, 4
      %s32 = sphi 0, %s34
      %s35 = sphi 0, %s32
      %s36 = sphi 0, %s35
      %s52 = sphi 0, %s36
      %s56 = sphi 0, %s56
      %s58 = sphi 0, %s56
      %s59 = sphi 0, %s58
      %s73 = sphi 0, %s59
      %s77 = sphi 0, %s77
      %s79 = sphi 0, %s77
      %s80 = sphi 0, %s79
      %s94 = sphi 0, %s80
      %s98 = sphi 0, %s98
      %s100 = sphi 0, %s98
      %s101 = sphi 0, %s100
      %s115 = sphi 0, %s101
      %s119 = sphi 0, %s119
      %s121 = sphi 0, %s119
      %s122 = sphi 0, %s121
      %s136 = sphi 0, %s122
      %s140 = sphi 0, %s140
      %s142 = sphi 0, %s140
      %s143 = sphi 0, %s142
      %s157 = sphi 0, %s143
      %s161 = sphi 0, %s161
      %s163 = sphi 0, %s161
      %s164 = sphi 0, %s163
      %s178 = sphi 0, %s164
      %s184 = sphi 0, %s186
      %s187 = sphi 0, %s184
      %s188 = sphi 0, %s187
      %s204 = sphi 0, %s188
      %s210 = sphi 0, %s212
      %s213 = sphi 0, %s210
      %s214 = sphi 0, %s213
      %s230 = sphi 0, %s214
    $region4: #{tpu_custom_call.1} parent=1 // loop_header_branch
      %25 = sbr.rel (%p23) target = $region8
    $region5: #{tpu_custom_call.1} parent=1 // loop_body
      %s27 = ssub.s32 %s22, 1
      %s28 = ssub.s32 %s22, 2
      %s29 = sadd.s32 %s22, 1
      %s30 = ssub.s32 %s22, %s29
      %p31 = scmp.eq.s32.totalorder %s30, 0
      %s33 = sadd.s32 %s32, 1
      %s34 = scalar_select %p31, %s32, %s33
      %p37 = pneg %p31
      %p38 = scmp.eq.s32.totalorder %s22, 1
      %p39 = por %p37, %p38
      %p40 = scmp.ne.s32.totalorder %s32, %s35
      %p41 = scmp.eq.s32.totalorder %s22, 0
      %p42 = por %p40, %p41
      %p43 = scmp.ne.s32.totalorder %s32, %s35
      %p44 = scmp.eq.s32.totalorder %s27, 1
      %p45 = por %p43, %p44
      %p46 = scmp.ne.s32.totalorder %s35, %s36
      %p47 = scmp.eq.s32.totalorder %s27, 0
      %p48 = por %p46, %p47
      %p49 = scmp.ne.s32.totalorder %s35, %s36
      %p50 = scmp.eq.s32.totalorder %s28, 1
      %p51 = por %p49, %p50
      %p53 = scmp.ne.s32.totalorder %s36, %s52
      %p54 = scmp.eq.s32.totalorder %s28, 0
      %p55 = por %p53, %p54
      %s57 = sadd.s32 %s56, 1
      %p60 = scmp.eq.s32.totalorder %s22, 1
      %p61 = scmp.ne.s32.totalorder %s56, %s58
      %p62 = scmp.eq.s32.totalorder %s22, 0
      %p63 = por %p61, %p62
      %p64 = scmp.ne.s32.totalorder %s56, %s58
      %p65 = scmp.eq.s32.totalorder %s27, 1
      %p66 = por %p64, %p65
      %p67 = scmp.ne.s32.totalorder %s58, %s59
      %p68 = scmp.eq.s32.totalorder %s27, 0
      %p69 = por %p67, %p68
      %p70 = scmp.ne.s32.totalorder %s58, %s59
      %p71 = scmp.eq.s32.totalorder %s28, 1
      %p72 = por %p70, %p71
      %p74 = scmp.ne.s32.totalorder %s59, %s73
      %p75 = scmp.eq.s32.totalorder %s28, 0
      %p76 = por %p74, %p75
      %s78 = sadd.s32 %s77, 1
      %p81 = scmp.eq.s32.totalorder %s22, 1
      %p82 = scmp.ne.s32.totalorder %s77, %s79
      %p83 = scmp.eq.s32.totalorder %s22, 0
      %p84 = por %p82, %p83
      %p85 = scmp.ne.s32.totalorder %s77, %s79
      %p86 = scmp.eq.s32.totalorder %s27, 1
      %p87 = por %p85, %p86
      %p88 = scmp.ne.s32.totalorder %s79, %s80
      %p89 = scmp.eq.s32.totalorder %s27, 0
      %p90 = por %p88, %p89
      %p91 = scmp.ne.s32.totalorder %s79, %s80
      %p92 = scmp.eq.s32.totalorder %s28, 1
      %p93 = por %p91, %p92
      %p95 = scmp.ne.s32.totalorder %s80, %s94
      %p96 = scmp.eq.s32.totalorder %s28, 0
      %p97 = por %p95, %p96
      %s99 = sadd.s32 %s98, 1
      %p102 = scmp.eq.s32.totalorder %s22, 1
      %p103 = scmp.ne.s32.totalorder %s98, %s100
      %p104 = scmp.eq.s32.totalorder %s22, 0
      %p105 = por %p103, %p104
      %p106 = scmp.ne.s32.totalorder %s98, %s100
      %p107 = scmp.eq.s32.totalorder %s27, 1
      %p108 = por %p106, %p107
      %p109 = scmp.ne.s32.totalorder %s100, %s101
      %p110 = scmp.eq.s32.totalorder %s27, 0
      %p111 = por %p109, %p110
      %p112 = scmp.ne.s32.totalorder %s100, %s101
      %p113 = scmp.eq.s32.totalorder %s28, 1
      %p114 = por %p112, %p113
      %p116 = scmp.ne.s32.totalorder %s101, %s115
      %p117 = scmp.eq.s32.totalorder %s28, 0
      %p118 = por %p116, %p117
      %s120 = sadd.s32 %s119, 1
      %p123 = scmp.eq.s32.totalorder %s22, 1
      %p124 = scmp.ne.s32.totalorder %s119, %s121
      %p125 = scmp.eq.s32.totalorder %s22, 0
      %p126 = por %p124, %p125
      %p127 = scmp.ne.s32.totalorder %s119, %s121
      %p128 = scmp.eq.s32.totalorder %s27, 1
      %p129 = por %p127, %p128
      %p130 = scmp.ne.s32.totalorder %s121, %s122
      %p131 = scmp.eq.s32.totalorder %s27, 0
      %p132 = por %p130, %p131
      %p133 = scmp.ne.s32.totalorder %s121, %s122
      %p134 = scmp.eq.s32.totalorder %s28, 1
      %p135 = por %p133, %p134
      %p137 = scmp.ne.s32.totalorder %s122, %s136
      %p138 = scmp.eq.s32.totalorder %s28, 0
      %p139 = por %p137, %p138
      %s141 = sadd.s32 %s140, 1
      %p144 = scmp.eq.s32.totalorder %s22, 1
      %p145 = scmp.ne.s32.totalorder %s140, %s142
      %p146 = scmp.eq.s32.totalorder %s22, 0
      %p147 = por %p145, %p146
      %p148 = scmp.ne.s32.totalorder %s140, %s142
      %p149 = scmp.eq.s32.totalorder %s27, 1
      %p150 = por %p148, %p149
      %p151 = scmp.ne.s32.totalorder %s142, %s143
      %p152 = scmp.eq.s32.totalorder %s27, 0
      %p153 = por %p151, %p152
      %p154 = scmp.ne.s32.totalorder %s142, %s143
      %p155 = scmp.eq.s32.totalorder %s28, 1
      %p156 = por %p154, %p155
      %p158 = scmp.ne.s32.totalorder %s143, %s157
      %p159 = scmp.eq.s32.totalorder %s28, 0
      %p160 = por %p158, %p159
      %s162 = sadd.s32 %s161, 1
      %p165 = scmp.eq.s32.totalorder %s22, 1
      %p166 = scmp.ne.s32.totalorder %s161, %s163
      %p167 = scmp.eq.s32.totalorder %s22, 0
      %p168 = por %p166, %p167
      %p169 = scmp.ne.s32.totalorder %s161, %s163
      %p170 = scmp.eq.s32.totalorder %s27, 1
      %p171 = por %p169, %p170
      %p172 = scmp.ne.s32.totalorder %s163, %s164
      %p173 = scmp.eq.s32.totalorder %s27, 0
      %p174 = por %p172, %p173
      %p175 = scmp.ne.s32.totalorder %s163, %s164
      %p176 = scmp.eq.s32.totalorder %s28, 1
      %p177 = por %p175, %p176
      %p179 = scmp.ne.s32.totalorder %s164, %s178
      %p180 = scmp.eq.s32.totalorder %s28, 0
      %p181 = por %p179, %p180
      %s182 = ssub.s32 %s22, %s29
      %p183 = scmp.eq.s32.totalorder %s182, 0
      %s185 = sadd.s32 %s184, 1
      %s186 = scalar_select %p183, %s184, %s185
      %p189 = pneg %p183
      %p190 = scmp.eq.s32.totalorder %s22, 1
      %p191 = por %p189, %p190
      %p192 = scmp.ne.s32.totalorder %s184, %s187
      %p193 = scmp.eq.s32.totalorder %s22, 0
      %p194 = por %p192, %p193
      %p195 = scmp.ne.s32.totalorder %s184, %s187
      %p196 = scmp.eq.s32.totalorder %s27, 1
      %p197 = por %p195, %p196
      %p198 = scmp.ne.s32.totalorder %s187, %s188
      %p199 = scmp.eq.s32.totalorder %s27, 0
      %p200 = por %p198, %p199
      %p201 = scmp.ne.s32.totalorder %s187, %s188
      %p202 = scmp.eq.s32.totalorder %s28, 1
      %p203 = por %p201, %p202
      %p205 = scmp.ne.s32.totalorder %s188, %s204
      %p206 = scmp.eq.s32.totalorder %s28, 0
      %p207 = por %p205, %p206
      %s208 = ssub.s32 %s22, %s29
      %p209 = scmp.eq.s32.totalorder %s208, 0
      %s211 = sadd.s32 %s210, 1
      %s212 = scalar_select %p209, %s210, %s211
      %p215 = pneg %p209
      %p216 = scmp.eq.s32.totalorder %s22, 1
      %p217 = por %p215, %p216
      %p218 = scmp.ne.s32.totalorder %s210, %s213
      %p219 = scmp.eq.s32.totalorder %s22, 0
      %p220 = por %p218, %p219
      %p221 = scmp.ne.s32.totalorder %s210, %s213
      %p222 = scmp.eq.s32.totalorder %s27, 1
      %p223 = por %p221, %p222
      %p224 = scmp.ne.s32.totalorder %s213, %s214
      %p225 = scmp.eq.s32.totalorder %s27, 0
      %p226 = por %p224, %p225
      %p227 = scmp.ne.s32.totalorder %s213, %s214
      %p228 = scmp.eq.s32.totalorder %s28, 1
      %p229 = por %p227, %p228
      %p231 = scmp.ne.s32.totalorder %s214, %s230
      %p232 = scmp.eq.s32.totalorder %s28, 0
      %p233 = por %p231, %p232
      %p234 = scmp.le.s32.totalorder 1, %s22
      %p235 = scmp.lt.s32.totalorder %s22, 3
      %p236 = pnand %p234, %p235
      %p237 = pneg %p236
      // Predicated region
      $region9: #{tpu_custom_call.1} parent=5 // pred_check
        _
      $region10: #{tpu_custom_call.1} parent=5 // pred_check_branch
        %239 = sbr.rel (%p236) target = $region12
      $region11: #{tpu_custom_call.1} parent=5 // pred_region
        %s240 = ssub.s32 %s22, 1
        // Predicated region
        $region13: #{tpu_custom_call.1} parent=11 // pred_check
          %p241 = pneg %p69
        $region14: #{tpu_custom_call.1} parent=11 // pred_check_branch
          %243 = sbr.rel (%p241) target = $region16
        $region15: #{tpu_custom_call.1} parent=11 // pred_region
          %s245 = ssub.s32 256, 256
          %246 = vsyncadd [#allocation6], %s245
          %s247 = sshll.u32 [#allocation5], 4
          %s248 = int_to_ptr.vmem [resolvable:$true] %s247
          %253 = dma.hbm_to_vmem [thread:$0]  %s1, 256, %s248, [#allocation6], 64, 64, 4
        $region16: #{tpu_custom_call.1} parent=11 // pred_fallthru
          _
        // Predicated region
        $region17: #{tpu_custom_call.1} parent=11 // pred_check
          %p254 = pneg %p90
        $region18: #{tpu_custom_call.1} parent=11 // pred_check_branch
          %256 = sbr.rel (%p254) target = $region20
        $region19: #{tpu_custom_call.1} parent=11 // pred_region
          %s258 = ssub.s32 256, 256
          %259 = vsyncadd [#allocation6], %s258
          %s260 = sshll.u32 [#allocation7], 4
          %s261 = int_to_ptr.vmem [resolvable:$true] %s260
          %266 = dma.hbm_to_vmem [thread:$0]  %s2, 256, %s261, [#allocation6], 64, 64, 4
        $region20: #{tpu_custom_call.1} parent=11 // pred_fallthru
          _
        // Predicated region
        $region21: #{tpu_custom_call.1} parent=11 // pred_check
          %p267 = pneg %p111
        $region22: #{tpu_custom_call.1} parent=11 // pred_check_branch
          %269 = sbr.rel (%p267) target = $region24
        $region23: #{tpu_custom_call.1} parent=11 // pred_region
          %s271 = ssub.s32 256, 256
          %272 = vsyncadd [#allocation9], %s271
          %s273 = sshll.u32 [#allocation8], 4
          %s274 = int_to_ptr.vmem [resolvable:$true] %s273
          %279 = dma.hbm_to_vmem [thread:$0]  %s3, 256, %s274, [#allocation9], 64, 64, 4
        $region24: #{tpu_custom_call.1} parent=11 // pred_fallthru
          _
        // Predicated region
        $region25: #{tpu_custom_call.1} parent=11 // pred_check
          %p280 = pneg %p132
        $region26: #{tpu_custom_call.1} parent=11 // pred_check_branch
          %282 = sbr.rel (%p280) target = $region28
        $region27: #{tpu_custom_call.1} parent=11 // pred_region
          _
        $region28: #{tpu_custom_call.1} parent=11 // pred_fallthru
          _
        // Predicated region
        $region29: #{tpu_custom_call.1} parent=11 // pred_check
          %p283 = pneg %p153
        $region30: #{tpu_custom_call.1} parent=11 // pred_check_branch
          %285 = sbr.rel (%p283) target = $region32
        $region31: #{tpu_custom_call.1} parent=11 // pred_region
          _
        $region32: #{tpu_custom_call.1} parent=11 // pred_fallthru
          _
        // Predicated region
        $region33: #{tpu_custom_call.1} parent=11 // pred_check
          %p286 = pneg %p174
        $region34: #{tpu_custom_call.1} parent=11 // pred_check_branch
          %288 = sbr.rel (%p286) target = $region36
        $region35: #{tpu_custom_call.1} parent=11 // pred_region
          _
        $region36: #{tpu_custom_call.1} parent=11 // pred_fallthru
          _
      $region12: #{tpu_custom_call.1} parent=5 // pred_fallthru
        _
      %p289 = scmp.lt.s32.totalorder %s22, 2
      // Predicated region
      $region37: #{tpu_custom_call.1} parent=5 // pred_check
        %p290 = pneg %p289
      $region38: #{tpu_custom_call.1} parent=5 // pred_check_branch
        %292 = sbr.rel (%p290) target = $region40
      $region39: #{tpu_custom_call.1} parent=5 // pred_region
        // Predicated region
        $region41: #{tpu_custom_call.1} parent=39 // pred_check
          %p293 = pneg %p42
        $region42: #{tpu_custom_call.1} parent=39 // pred_check_branch
          %295 = sbr.rel (%p293) target = $region44
        $region43: #{tpu_custom_call.1} parent=39 // pred_region
          %s296 = sand.u32 %s32, 1
          %s297 = scalar_lea.sflag [#allocation3], %s296
          %s298 = sand.u32 %s32, 1
          %s299 = smul.addr %s298, 4
          %s300 = scalar_lea.vmem [#allocation2], %s299
          %s302 = ssub.s32 64, 64
          %303 = vsyncadd %s297, %s302
          %s304 = smul.addr %s22, 64
          %s305 = scalar_lea.hbm %s0, %s304
          %s307 = sshll.u32 %s300, 4
          %s308 = int_to_ptr.vmem [resolvable:$true] %s307
          %310 = dma.hbm_to_vmem [thread:$0]  %s305, 64, %s308, %s297
        $region44: #{tpu_custom_call.1} parent=39 // pred_fallthru
          _
        // Predicated region
        $region45: #{tpu_custom_call.1} parent=39 // pred_check
          %p311 = pneg %p194
        $region46: #{tpu_custom_call.1} parent=39 // pred_check_branch
          %313 = sbr.rel (%p311) target = $region48
        $region47: #{tpu_custom_call.1} parent=39 // pred_region
          %p314 = scmp.lt.s32.totalorder %s22, 1
          %s315 = scalar_select %p314, %s22, 1
          %s316 = scalar_lea.vmem %s7, %s315
        $region48: #{tpu_custom_call.1} parent=39 // pred_fallthru
          _
      $region40: #{tpu_custom_call.1} parent=5 // pred_fallthru
        _
      %p317 = scmp.le.s32.totalorder 1, %s22
      %p318 = scmp.lt.s32.totalorder %s22, 3
      %p319 = pnand %p317, %p318
      %p320 = pneg %p319
      // Predicated region
      $region49: #{tpu_custom_call.1} parent=5 // pred_check
        _
      $region50: #{tpu_custom_call.1} parent=5 // pred_check_branch
        %322 = sbr.rel (%p319) target = $region52
      $region51: #{tpu_custom_call.1} parent=5 // pred_region
        %s323 = ssub.s32 %s22, 1
        %s324 = sand.u32 %s35, 1
        %s325 = scalar_lea.sflag [#allocation3], %s324
        %s326 = sand.u32 %s35, 1
        %s327 = smul.addr %s326, 4
        %s328 = scalar_lea.vmem [#allocation2], %s327
        // Predicated region
        $region53: #{tpu_custom_call.1} parent=51 // pred_check
          %p329 = pneg %p48
        $region54: #{tpu_custom_call.1} parent=51 // pred_check_branch
          %331 = sbr.rel (%p329) target = $region56
        $region55: #{tpu_custom_call.1} parent=51 // pred_region
          %332 = dma.done %s325, 64
        $region56: #{tpu_custom_call.1} parent=51 // pred_fallthru
          _
        // Predicated region
        $region57: #{tpu_custom_call.1} parent=51 // pred_check
          %p333 = pneg %p69
        $region58: #{tpu_custom_call.1} parent=51 // pred_check_branch
          %335 = sbr.rel (%p333) target = $region60
        $region59: #{tpu_custom_call.1} parent=51 // pred_region
          %336 = dma.done [#allocation6], 256
        $region60: #{tpu_custom_call.1} parent=51 // pred_fallthru
          _
        // Predicated region
        $region61: #{tpu_custom_call.1} parent=51 // pred_check
          %p337 = pneg %p90
        $region62: #{tpu_custom_call.1} parent=51 // pred_check_branch
          %339 = sbr.rel (%p337) target = $region64
        $region63: #{tpu_custom_call.1} parent=51 // pred_region
          %340 = dma.done [#allocation6], 256
        $region64: #{tpu_custom_call.1} parent=51 // pred_fallthru
          _
        // Predicated region
        $region65: #{tpu_custom_call.1} parent=51 // pred_check
          %p341 = pneg %p111
        $region66: #{tpu_custom_call.1} parent=51 // pred_check_branch
          %343 = sbr.rel (%p341) target = $region68
        $region67: #{tpu_custom_call.1} parent=51 // pred_region
          %344 = dma.done [#allocation9], 256
        $region68: #{tpu_custom_call.1} parent=51 // pred_fallthru
          _
        %s345 = sand.u32 %s35, 1
        %s346 = scalar_lea.sflag [#allocation3], %s345
        %s347 = sand.u32 %s35, 1
        %s348 = smul.addr %s347, 4
        %s349 = scalar_lea.vmem [#allocation2], %s348
        %p350 = pneg %p48
        %p351 = pneg %p45
        %p352 = pneg %p69
        %p353 = pneg %p66
        %p354 = pneg %p90
        %p355 = pneg %p87
        %p356 = pneg %p111
        %p357 = pneg %p108
        %p358 = pneg %p132
        %p359 = pneg %p129
        %p360 = pneg %p153
        %p361 = pneg %p150
        %p362 = pneg %p174
        %p363 = pneg %p171
        %p364 = scmp.lt.s32.totalorder %s27, 1
        %s365 = scalar_select %p364, %s27, 1
        %s366 = scalar_lea.vmem %s7, %s365
        %p367 = pneg %p200
        %p368 = pneg %p197
        %p369 = pneg %p226
        %p370 = pneg %p223
        %s371 = sand.u32 %s213, 1
        %s372 = scalar_lea.sflag [#allocation4], %s371
        %s373 = sand.u32 %s213, 1
        %s374 = smul.addr %s373, 8
        %s375 = scalar_lea.vmem [#allocation10], %s374
        %p376 = scmp.lt.s32.totalorder %s27, 1
        %s377 = scalar_select %p376, %s27, 1
        %s378 = scalar_lea.vmem %s7, %s377
        %v380 = vld [vmem:[%s328] sm:$0xf]
        %v381 = vld [vmem:[#allocation5] sm:$0xf]
        %v382 = vld [vmem:[#allocation5 + $0x4] sm:$0xf]
        %v383 = vld [vmem:[#allocation5 + $0x8] sm:$0xf]
        %v384 = vld [vmem:[#allocation5 + $0xc] sm:$0xf]
        %v385 = vld [vmem:[%s4] sm:$0x1]
        %v387 = vlaneseq
        %v388 = vshrl.u32 %v387, 7
        %v389 = vsub.s32 0, %v388
        %v390 = vrot.slane %v385, %v389
        %v396 = vunpack.c.l.b16 %v381
        %v397 = vunpack.c.l.b16 %v382
        %v398 = vunpack.c.l.b16 %v383
        %v399 = vunpack.c.l.b16 %v384
        %v400 = vpack.c.b16 %v397, %v396
        %v401 = vpack.c.b16 %v399, %v398
        %vm404 = vcmask 261120
        %v406 = vsel %vm404, %v380, 0
        %408 = vmatprep.subr.bf16.mxu0 0
        %409 = vmatpush1.bf16.msra.mxu0 %v400
        %410 = vmatprep.subr.bf16.mxu0 0
        %411 = vmatpush1.bf16.msra.mxu0 %v401
        %412 = vmatprep.subr.bf16.mxu0 0
        %413 = vmatpush1.bf16.msra.mxu0 0
        %414 = vmatprep.subr.bf16.mxu0 0
        %415 = vmatpush1.bf16.msra.mxu0 0
        %416 = vmatprep.subr.bf16.mxu0 0
        %417 = vmatpush1.bf16.msra.mxu0 0
        %418 = vmatprep.subr.bf16.mxu0 0
        %419 = vmatpush1.bf16.msra.mxu0 0
        %420 = vmatprep.subr.bf16.mxu0 0
        %421 = vmatpush1.bf16.msra.mxu0 0
        %422 = vmatprep.subr.bf16.mxu0 0
        %423 = vmatpush1.bf16.msra.mxu0 0
        %424 = vmatprep.subr.bf16.mxu0 0
        %425 = vmatpush1.bf16.msra.mxu0 0
        %426 = vmatprep.subr.bf16.mxu0 0
        %427 = vmatpush1.bf16.msra.mxu0 0
        %428 = vmatprep.subr.bf16.mxu0 0
        %429 = vmatpush1.bf16.msra.mxu0 0
        %430 = vmatprep.subr.bf16.mxu0 0
        %431 = vmatpush1.bf16.msra.mxu0 0
        %432 = vmatprep.subr.bf16.mxu0 0
        %433 = vmatpush1.bf16.msra.mxu0 0
        %434 = vmatprep.subr.bf16.mxu0 0
        %435 = vmatpush1.bf16.msra.mxu0 0
        %436 = vmatprep.subr.bf16.mxu0 0
        %437 = vmatpush1.bf16.msra.mxu0 0
        %438 = vmatprep.subr.bf16.mxu0 0
        %439 = vmatpush1.bf16.msra.mxu0 0
        %440 = vmatprep.mubr.bf16.mxu0 0
        %441 = vmatmul.mubr.bf16.gmra.mrb[0].mxu0 %v406
        %v442 = vpop.f32.mrb[0].mxu0
        %v443 = vadd.f32 %v390, %v442
        %v444 = vpop.f32.mrb[0].mxu0
        %v445 = vpop.f32.mrb[0].mxu0
        %v446 = vpop.f32.mrb[0].mxu0
        %447 = vdwg.mxu0
        %v448 = vld [vmem:[#allocation7] sm:$0xf]
        %v449 = vld [vmem:[#allocation7 + $0x4] sm:$0xf]
        %v450 = vld [vmem:[#allocation7 + $0x8] sm:$0xf]
        %v451 = vld [vmem:[#allocation7 + $0xc] sm:$0xf]
        %v452 = vld [vmem:[%s5] sm:$0x1]
        %v454 = vlaneseq
        %v455 = vshrl.u32 %v454, 7
        %v456 = vsub.s32 0, %v455
        %v457 = vrot.slane %v452, %v456
        %v463 = vunpack.c.l.b16 %v448
        %v464 = vunpack.c.l.b16 %v449
        %v465 = vunpack.c.l.b16 %v450
        %v466 = vunpack.c.l.b16 %v451
        %v467 = vpack.c.b16 %v464, %v463
        %v468 = vpack.c.b16 %v466, %v465
        %471 = vmatprep.subr.bf16.mxu0 0
        %472 = vmatpush1.bf16.msra.mxu0 %v467
        %473 = vmatprep.subr.bf16.mxu0 0
        %474 = vmatpush1.bf16.msra.mxu0 %v468
        %475 = vmatprep.subr.bf16.mxu0 0
        %476 = vmatpush1.bf16.msra.mxu0 0
        %477 = vmatprep.subr.bf16.mxu0 0
        %478 = vmatpush1.bf16.msra.mxu0 0
        %479 = vmatprep.subr.bf16.mxu0 0
        %480 = vmatpush1.bf16.msra.mxu0 0
        %481 = vmatprep.subr.bf16.mxu0 0
        %482 = vmatpush1.bf16.msra.mxu0 0
        %483 = vmatprep.subr.bf16.mxu0 0
        %484 = vmatpush1.bf16.msra.mxu0 0
        %485 = vmatprep.subr.bf16.mxu0 0
        %486 = vmatpush1.bf16.msra.mxu0 0
        %487 = vmatprep.subr.bf16.mxu0 0
        %488 = vmatpush1.bf16.msra.mxu0 0
        %489 = vmatprep.subr.bf16.mxu0 0
        %490 = vmatpush1.bf16.msra.mxu0 0
        %491 = vmatprep.subr.bf16.mxu0 0
        %492 = vmatpush1.bf16.msra.mxu0 0
        %493 = vmatprep.subr.bf16.mxu0 0
        %494 = vmatpush1.bf16.msra.mxu0 0
        %495 = vmatprep.subr.bf16.mxu0 0
        %496 = vmatpush1.bf16.msra.mxu0 0
        %497 = vmatprep.subr.bf16.mxu0 0
        %498 = vmatpush1.bf16.msra.mxu0 0
        %499 = vmatprep.subr.bf16.mxu0 0
        %500 = vmatpush1.bf16.msra.mxu0 0
        %501 = vmatprep.subr.bf16.mxu0 0
        %502 = vmatpush1.bf16.msra.mxu0 0
        %503 = vmatprep.mubr.bf16.mxu0 0
        %504 = vmatmul.mubr.bf16.gmra.mrb[0].mxu0 %v406
        %v505 = vpop.f32.mrb[0].mxu0
        %v506 = vadd.f32 %v457, %v505
        %v507 = vpop.f32.mrb[0].mxu0
        %v508 = vpop.f32.mrb[0].mxu0
        %v509 = vpop.f32.mrb[0].mxu0
        %510 = vdwg.mxu0
        %v511 = vld [vmem:[#allocation8] sm:$0xf]
        %v512 = vld [vmem:[#allocation8 + $0x4] sm:$0xf]
        %v513 = vld [vmem:[#allocation8 + $0x8] sm:$0xf]
        %v514 = vld [vmem:[#allocation8 + $0xc] sm:$0xf]
        %v515 = vld [vmem:[%s6] sm:$0x1]
        %v517 = vlaneseq
        %v518 = vshrl.u32 %v517, 7
        %v519 = vsub.s32 0, %v518
        %v520 = vrot.slane %v515, %v519
        %v526 = vunpack.c.l.b16 %v511
        %v527 = vunpack.c.l.b16 %v512
        %v528 = vunpack.c.l.b16 %v513
        %v529 = vunpack.c.l.b16 %v514
        %v530 = vpack.c.b16 %v527, %v526
        %v531 = vpack.c.b16 %v529, %v528
        %534 = vmatprep.subr.bf16.mxu0 0
        %535 = vmatpush1.bf16.msra.mxu0 %v530
        %536 = vmatprep.subr.bf16.mxu0 0
        %537 = vmatpush1.bf16.msra.mxu0 %v531
        %538 = vmatprep.subr.bf16.mxu0 0
        %539 = vmatpush1.bf16.msra.mxu0 0
        %540 = vmatprep.subr.bf16.mxu0 0
        %541 = vmatpush1.bf16.msra.mxu0 0
        %542 = vmatprep.subr.bf16.mxu0 0
        %543 = vmatpush1.bf16.msra.mxu0 0
        %544 = vmatprep.subr.bf16.mxu0 0
        %545 = vmatpush1.bf16.msra.mxu0 0
        %546 = vmatprep.subr.bf16.mxu0 0
        %547 = vmatpush1.bf16.msra.mxu0 0
        %548 = vmatprep.subr.bf16.mxu0 0
        %549 = vmatpush1.bf16.msra.mxu0 0
        %550 = vmatprep.subr.bf16.mxu0 0
        %551 = vmatpush1.bf16.msra.mxu0 0
        %552 = vmatprep.subr.bf16.mxu0 0
        %553 = vmatpush1.bf16.msra.mxu0 0
        %554 = vmatprep.subr.bf16.mxu0 0
        %555 = vmatpush1.bf16.msra.mxu0 0
        %556 = vmatprep.subr.bf16.mxu0 0
        %557 = vmatpush1.bf16.msra.mxu0 0
        %558 = vmatprep.subr.bf16.mxu0 0
        %559 = vmatpush1.bf16.msra.mxu0 0
        %560 = vmatprep.subr.bf16.mxu0 0
        %561 = vmatpush1.bf16.msra.mxu0 0
        %562 = vmatprep.subr.bf16.mxu0 0
        %563 = vmatpush1.bf16.msra.mxu0 0
        %564 = vmatprep.subr.bf16.mxu0 0
        %565 = vmatpush1.bf16.msra.mxu0 0
        %566 = vmatprep.mubr.bf16.mxu0 0
        %567 = vmatmul.mubr.bf16.gmra.mrb[0].mxu0 %v406
        %v568 = vpop.f32.mrb[0].mxu0
        %v569 = vadd.f32 %v520, %v568
        %v570 = vpop.f32.mrb[0].mxu0
        %v571 = vpop.f32.mrb[0].mxu0
        %v572 = vpop.f32.mrb[0].mxu0
        %573 = vdwg.mxu0
        %v574 = vld [vmem:[%s378] sm:$0x1]
        %v575 = vpack.c.bf16 %v443, %v443
        %v576 = vpack.c.bf16 %v506, %v506
        %v577 = vpack.c.bf16 %v569, %v569
        %v579 = vlaneseq
        %v580 = vshrl.u32 %v579, 7
        %v581 = vsub.s32 0, %v580
        %v582 = vrot.slane %v574, %v581
        %vm584 = vcmask 64512
        %v586 = vsel %vm584, %v575, 0
        %v589 = vsel %vm584, %v576, 0
        %591 = vmatprep.subr.bf16.mxu0 0
        %592 = vmatpush1.bf16.xpose.msra.mxu0 %v589
        %593 = vmatprep.subr.bf16.mxu0 0
        %594 = vmatpush1.bf16.xpose.msra.mxu0 0
        %595 = vmatprep.subr.bf16.mxu0 0
        %596 = vmatpush1.bf16.xpose.msra.mxu0 0
        %597 = vmatprep.subr.bf16.mxu0 0
        %598 = vmatpush1.bf16.xpose.msra.mxu0 0
        %599 = vmatprep.subr.bf16.mxu0 0
        %600 = vmatpush1.bf16.xpose.msra.mxu0 0
        %601 = vmatprep.subr.bf16.mxu0 0
        %602 = vmatpush1.bf16.xpose.msra.mxu0 0
        %603 = vmatprep.subr.bf16.mxu0 0
        %604 = vmatpush1.bf16.xpose.msra.mxu0 0
        %605 = vmatprep.subr.bf16.mxu0 0
        %606 = vmatpush1.bf16.xpose.msra.mxu0 0
        %607 = vmatprep.subr.bf16.mxu0 0
        %608 = vmatpush1.bf16.xpose.msra.mxu0 0
        %609 = vmatprep.subr.bf16.mxu0 0
        %610 = vmatpush1.bf16.xpose.msra.mxu0 0
        %611 = vmatprep.subr.bf16.mxu0 0
        %612 = vmatpush1.bf16.xpose.msra.mxu0 0
        %613 = vmatprep.subr.bf16.mxu0 0
        %614 = vmatpush1.bf16.xpose.msra.mxu0 0
        %615 = vmatprep.subr.bf16.mxu0 0
        %616 = vmatpush1.bf16.xpose.msra.mxu0 0
        %617 = vmatprep.subr.bf16.mxu0 0
        %618 = vmatpush1.bf16.xpose.msra.mxu0 0
        %619 = vmatprep.subr.bf16.mxu0 0
        %620 = vmatpush1.bf16.xpose.msra.mxu0 0
        %621 = vmatprep.subr.bf16.mxu0 0
        %622 = vmatpush1.bf16.xpose.msra.mxu0 0
        %623 = vmatprep.mubr.bf16.mxu0 0
        %624 = vmatmul.mubr.bf16.gmra.mrb[0].mxu0 %v586
        %v625 = vpop.f32.mrb[0].mxu0
        %v626 = vadd.f32 %v582, %v625
        %v627 = vpop.f32.mrb[0].mxu0
        %v628 = vpop.f32.mrb[0].mxu0
        %v629 = vpop.f32.mrb[0].mxu0
        %630 = vdwg.mxu0
        %v631 = vsel %vm584, %v626, -inf
        %632 = vmax.xlane.f32.xlu0 %v631
        %v633 = vpop.xlane.xlu0 %632
        %v634 = vsub.f32 %v626, %v633
        %v635 = vmul.f32 %v634, 1.442695
        %v636 = vpow.pop %v635
        %v637 = vsel %vm584, %v636, 0.0
        %638 = vadd.xlane.f32.xlu0 %v637
        %v639 = vpop.xlane.xlu0 %638
        %v640 = vpack.c.bf16 %v636, %v636
        %v642 = vsel %vm584, %v640, 0
        %vm644 = vcmask 1043456
        %v646 = vsel %vm644, %v577, 0
        %648 = vmatprep.subr.bf16.mxu0 0
        %649 = vmatpush1.bf16.msra.mxu0 %v646
        %650 = vmatprep.subr.bf16.mxu0 0
        %651 = vmatpush1.bf16.msra.mxu0 0
        %652 = vmatprep.subr.bf16.mxu0 0
        %653 = vmatpush1.bf16.msra.mxu0 0
        %654 = vmatprep.subr.bf16.mxu0 0
        %655 = vmatpush1.bf16.msra.mxu0 0
        %656 = vmatprep.subr.bf16.mxu0 0
        %657 = vmatpush1.bf16.msra.mxu0 0
        %658 = vmatprep.subr.bf16.mxu0 0
        %659 = vmatpush1.bf16.msra.mxu0 0
        %660 = vmatprep.subr.bf16.mxu0 0
        %661 = vmatpush1.bf16.msra.mxu0 0
        %662 = vmatprep.subr.bf16.mxu0 0
        %663 = vmatpush1.bf16.msra.mxu0 0
        %664 = vmatprep.subr.bf16.mxu0 0
        %665 = vmatpush1.bf16.msra.mxu0 0
        %666 = vmatprep.subr.bf16.mxu0 0
        %667 = vmatpush1.bf16.msra.mxu0 0
        %668 = vmatprep.subr.bf16.mxu0 0
        %669 = vmatpush1.bf16.msra.mxu0 0
        %670 = vmatprep.subr.bf16.mxu0 0
        %671 = vmatpush1.bf16.msra.mxu0 0
        %672 = vmatprep.subr.bf16.mxu0 0
        %673 = vmatpush1.bf16.msra.mxu0 0
        %674 = vmatprep.subr.bf16.mxu0 0
        %675 = vmatpush1.bf16.msra.mxu0 0
        %676 = vmatprep.subr.bf16.mxu0 0
        %677 = vmatpush1.bf16.msra.mxu0 0
        %678 = vmatprep.subr.bf16.mxu0 0
        %679 = vmatpush1.bf16.msra.mxu0 0
        %680 = vmatprep.mubr.bf16.mxu0 0
        %681 = vmatmul.mubr.bf16.gmra.mrb[0].mxu0 %v642
        %v682 = vpop.f32.mrb[0].mxu0
        %v683 = vadd.f32 0.0, %v682
        %v684 = vpop.f32.mrb[0].mxu0
        %v685 = vpop.f32.mrb[0].mxu0
        %v686 = vpop.f32.mrb[0].mxu0
        %687 = vdwg.mxu0
        %v688 = vrcp.pop %v639
        %v689 = vmul.f32 %v683, %v688
        %691 = vrot.lane.b32.xlu0 %v575, 120
        %v692 = vpop.permute.xlu0 %691
        %694 = vrot.lane.b32.xlu0 %v576, 120
        %v695 = vpop.permute.xlu0 %694
        %v697 = vsel %vm584, %v692, 0
        %v700 = vsel %vm584, %v695, 0
        %702 = vmatprep.subr.bf16.mxu0 0
        %703 = vmatpush1.bf16.xpose.msra.mxu0 %v700
        %704 = vmatprep.subr.bf16.mxu0 0
        %705 = vmatpush1.bf16.xpose.msra.mxu0 0
        %706 = vmatprep.subr.bf16.mxu0 0
        %707 = vmatpush1.bf16.xpose.msra.mxu0 0
        %708 = vmatprep.subr.bf16.mxu0 0
        %709 = vmatpush1.bf16.xpose.msra.mxu0 0
        %710 = vmatprep.subr.bf16.mxu0 0
        %711 = vmatpush1.bf16.xpose.msra.mxu0 0
        %712 = vmatprep.subr.bf16.mxu0 0
        %713 = vmatpush1.bf16.xpose.msra.mxu0 0
        %714 = vmatprep.subr.bf16.mxu0 0
        %715 = vmatpush1.bf16.xpose.msra.mxu0 0
        %716 = vmatprep.subr.bf16.mxu0 0
        %717 = vmatpush1.bf16.xpose.msra.mxu0 0
        %718 = vmatprep.subr.bf16.mxu0 0
        %719 = vmatpush1.bf16.xpose.msra.mxu0 0
        %720 = vmatprep.subr.bf16.mxu0 0
        %721 = vmatpush1.bf16.xpose.msra.mxu0 0
        %722 = vmatprep.subr.bf16.mxu0 0
        %723 = vmatpush1.bf16.xpose.msra.mxu0 0
        %724 = vmatprep.subr.bf16.mxu0 0
        %725 = vmatpush1.bf16.xpose.msra.mxu0 0
        %726 = vmatprep.subr.bf16.mxu0 0
        %727 = vmatpush1.bf16.xpose.msra.mxu0 0
        %728 = vmatprep.subr.bf16.mxu0 0
        %729 = vmatpush1.bf16.xpose.msra.mxu0 0
        %730 = vmatprep.subr.bf16.mxu0 0
        %731 = vmatpush1.bf16.xpose.msra.mxu0 0
        %732 = vmatprep.subr.bf16.mxu0 0
        %733 = vmatpush1.bf16.xpose.msra.mxu0 0
        %734 = vmatprep.mubr.bf16.mxu0 0
        %735 = vmatmul.mubr.bf16.gmra.mrb[0].mxu0 %v697
        %v736 = vpop.f32.mrb[0].mxu0
        %v737 = vadd.f32 %v582, %v736
        %v738 = vpop.f32.mrb[0].mxu0
        %v739 = vpop.f32.mrb[0].mxu0
        %v740 = vpop.f32.mrb[0].mxu0
        %741 = vdwg.mxu0
        %v742 = vsel %vm584, %v737, -inf
        %743 = vmax.xlane.f32.xlu0 %v742
        %v744 = vpop.xlane.xlu0 %743
        %v745 = vsub.f32 %v737, %v744
        %v746 = vmul.f32 %v745, 1.442695
        %v747 = vpow.pop %v746
        %v748 = vsel %vm584, %v747, 0.0
        %749 = vadd.xlane.f32.xlu0 %v748
        %v750 = vpop.xlane.xlu0 %749
        %v751 = vpack.c.bf16 %v747, %v747
        %753 = vrot.lane.b32.xlu0 %v577, 120
        %v754 = vpop.permute.xlu0 %753
        %v756 = vsel %vm584, %v751, 0
        %v759 = vsel %vm644, %v754, 0
        %761 = vmatprep.subr.bf16.mxu0 0
        %762 = vmatpush1.bf16.msra.mxu0 %v759
        %763 = vmatprep.subr.bf16.mxu0 0
        %764 = vmatpush1.bf16.msra.mxu0 0
        %765 = vmatprep.subr.bf16.mxu0 0
        %766 = vmatpush1.bf16.msra.mxu0 0
        %767 = vmatprep.subr.bf16.mxu0 0
        %768 = vmatpush1.bf16.msra.mxu0 0
        %769 = vmatprep.subr.bf16.mxu0 0
        %770 = vmatpush1.bf16.msra.mxu0 0
        %771 = vmatprep.subr.bf16.mxu0 0
        %772 = vmatpush1.bf16.msra.mxu0 0
        %773 = vmatprep.subr.bf16.mxu0 0
        %774 = vmatpush1.bf16.msra.mxu0 0
        %775 = vmatprep.subr.bf16.mxu0 0
        %776 = vmatpush1.bf16.msra.mxu0 0
        %777 = vmatprep.subr.bf16.mxu0 0
        %778 = vmatpush1.bf16.msra.mxu0 0
        %779 = vmatprep.subr.bf16.mxu0 0
        %780 = vmatpush1.bf16.msra.mxu0 0
        %781 = vmatprep.subr.bf16.mxu0 0
        %782 = vmatpush1.bf16.msra.mxu0 0
        %783 = vmatprep.subr.bf16.mxu0 0
        %784 = vmatpush1.bf16.msra.mxu0 0
        %785 = vmatprep.subr.bf16.mxu0 0
        %786 = vmatpush1.bf16.msra.mxu0 0
        %787 = vmatprep.subr.bf16.mxu0 0
        %788 = vmatpush1.bf16.msra.mxu0 0
        %789 = vmatprep.subr.bf16.mxu0 0
        %790 = vmatpush1.bf16.msra.mxu0 0
        %791 = vmatprep.subr.bf16.mxu0 0
        %792 = vmatpush1.bf16.msra.mxu0 0
        %793 = vmatprep.mubr.bf16.mxu0 0
        %794 = vmatmul.mubr.bf16.gmra.mrb[0].mxu0 %v756
        %v795 = vpop.f32.mrb[0].mxu0
        %v796 = vadd.f32 0.0, %v795
        %v797 = vpop.f32.mrb[0].mxu0
        %v798 = vpop.f32.mrb[0].mxu0
        %v799 = vpop.f32.mrb[0].mxu0
        %800 = vdwg.mxu0
        %v801 = vrcp.pop %v750
        %v802 = vmul.f32 %v796, %v801
        %803 = vrot.lane.b32.xlu0 %v575, 112
        %v804 = vpop.permute.xlu0 %803
        %805 = vrot.lane.b32.xlu0 %v576, 112
        %v806 = vpop.permute.xlu0 %805
        %v808 = vsel %vm584, %v804, 0
        %v811 = vsel %vm584, %v806, 0
        %813 = vmatprep.subr.bf16.mxu0 0
        %814 = vmatpush1.bf16.xpose.msra.mxu0 %v811
        %815 = vmatprep.subr.bf16.mxu0 0
        %816 = vmatpush1.bf16.xpose.msra.mxu0 0
        %817 = vmatprep.subr.bf16.mxu0 0
        %818 = vmatpush1.bf16.xpose.msra.mxu0 0
        %819 = vmatprep.subr.bf16.mxu0 0
        %820 = vmatpush1.bf16.xpose.msra.mxu0 0
        %821 = vmatprep.subr.bf16.mxu0 0
        %822 = vmatpush1.bf16.xpose.msra.mxu0 0
        %823 = vmatprep.subr.bf16.mxu0 0
        %824 = vmatpush1.bf16.xpose.msra.mxu0 0
        %825 = vmatprep.subr.bf16.mxu0 0
        %826 = vmatpush1.bf16.xpose.msra.mxu0 0
        %827 = vmatprep.subr.bf16.mxu0 0
        %828 = vmatpush1.bf16.xpose.msra.mxu0 0
        %829 = vmatprep.subr.bf16.mxu0 0
        %830 = vmatpush1.bf16.xpose.msra.mxu0 0
        %831 = vmatprep.subr.bf16.mxu0 0
        %832 = vmatpush1.bf16.xpose.msra.mxu0 0
        %833 = vmatprep.subr.bf16.mxu0 0
        %834 = vmatpush1.bf16.xpose.msra.mxu0 0
        %835 = vmatprep.subr.bf16.mxu0 0
        %836 = vmatpush1.bf16.xpose.msra.mxu0 0
        %837 = vmatprep.subr.bf16.mxu0 0
        %838 = vmatpush1.bf16.xpose.msra.mxu0 0
        %839 = vmatprep.subr.bf16.mxu0 0
        %840 = vmatpush1.bf16.xpose.msra.mxu0 0
        %841 = vmatprep.subr.bf16.mxu0 0
        %842 = vmatpush1.bf16.xpose.msra.mxu0 0
        %843 = vmatprep.subr.bf16.mxu0 0
        %844 = vmatpush1.bf16.xpose.msra.mxu0 0
        %845 = vmatprep.mubr.bf16.mxu0 0
        %846 = vmatmul.mubr.bf16.gmra.mrb[0].mxu0 %v808
        %v847 = vpop.f32.mrb[0].mxu0
        %v848 = vadd.f32 %v582, %v847
        %v849 = vpop.f32.mrb[0].mxu0
        %v850 = vpop.f32.mrb[0].mxu0
        %v851 = vpop.f32.mrb[0].mxu0
        %852 = vdwg.mxu0
        %v853 = vsel %vm584, %v848, -inf
        %854 = vmax.xlane.f32.xlu0 %v853
        %v855 = vpop.xlane.xlu0 %854
        %v856 = vsub.f32 %v848, %v855
        %v857 = vmul.f32 %v856, 1.442695
        %v858 = vpow.pop %v857
        %v859 = vsel %vm584, %v858, 0.0
        %860 = vadd.xlane.f32.xlu0 %v859
        %v861 = vpop.xlane.xlu0 %860
        %v862 = vpack.c.bf16 %v858, %v858
        %863 = vrot.lane.b32.xlu0 %v577, 112
        %v864 = vpop.permute.xlu0 %863
        %v866 = vsel %vm584, %v862, 0
        %v869 = vsel %vm644, %v864, 0
        %871 = vmatprep.subr.bf16.mxu0 0
        %872 = vmatpush1.bf16.msra.mxu0 %v869
        %873 = vmatprep.subr.bf16.mxu0 0
        %874 = vmatpush1.bf16.msra.mxu0 0
        %875 = vmatprep.subr.bf16.mxu0 0
        %876 = vmatpush1.bf16.msra.mxu0 0
        %877 = vmatprep.subr.bf16.mxu0 0
        %878 = vmatpush1.bf16.msra.mxu0 0
        %879 = vmatprep.subr.bf16.mxu0 0
        %880 = vmatpush1.bf16.msra.mxu0 0
        %881 = vmatprep.subr.bf16.mxu0 0
        %882 = vmatpush1.bf16.msra.mxu0 0
        %883 = vmatprep.subr.bf16.mxu0 0
        %884 = vmatpush1.bf16.msra.mxu0 0
        %885 = vmatprep.subr.bf16.mxu0 0
        %886 = vmatpush1.bf16.msra.mxu0 0
        %887 = vmatprep.subr.bf16.mxu0 0
        %888 = vmatpush1.bf16.msra.mxu0 0
        %889 = vmatprep.subr.bf16.mxu0 0
        %890 = vmatpush1.bf16.msra.mxu0 0
        %891 = vmatprep.subr.bf16.mxu0 0
        %892 = vmatpush1.bf16.msra.mxu0 0
        %893 = vmatprep.subr.bf16.mxu0 0
        %894 = vmatpush1.bf16.msra.mxu0 0
        %895 = vmatprep.subr.bf16.mxu0 0
        %896 = vmatpush1.bf16.msra.mxu0 0
        %897 = vmatprep.subr.bf16.mxu0 0
        %898 = vmatpush1.bf16.msra.mxu0 0
        %899 = vmatprep.subr.bf16.mxu0 0
        %900 = vmatpush1.bf16.msra.mxu0 0
        %901 = vmatprep.subr.bf16.mxu0 0
        %902 = vmatpush1.bf16.msra.mxu0 0
        %903 = vmatprep.mubr.bf16.mxu0 0
        %904 = vmatmul.mubr.bf16.gmra.mrb[0].mxu0 %v866
        %v905 = vpop.f32.mrb[0].mxu0
        %v906 = vadd.f32 0.0, %v905
        %v907 = vpop.f32.mrb[0].mxu0
        %v908 = vpop.f32.mrb[0].mxu0
        %v909 = vpop.f32.mrb[0].mxu0
        %910 = vdwg.mxu0
        %v911 = vrcp.pop %v861
        %v912 = vmul.f32 %v906, %v911
        %913 = vrot.lane.b32.xlu0 %v575, 104
        %v914 = vpop.permute.xlu0 %913
        %915 = vrot.lane.b32.xlu0 %v576, 104
        %v916 = vpop.permute.xlu0 %915
        %v918 = vsel %vm584, %v914, 0
        %v921 = vsel %vm584, %v916, 0
        %923 = vmatprep.subr.bf16.mxu0 0
        %924 = vmatpush1.bf16.xpose.msra.mxu0 %v921
        %925 = vmatprep.subr.bf16.mxu0 0
        %926 = vmatpush1.bf16.xpose.msra.mxu0 0
        %927 = vmatprep.subr.bf16.mxu0 0
        %928 = vmatpush1.bf16.xpose.msra.mxu0 0
        %929 = vmatprep.subr.bf16.mxu0 0
        %930 = vmatpush1.bf16.xpose.msra.mxu0 0
        %931 = vmatprep.subr.bf16.mxu0 0
        %932 = vmatpush1.bf16.xpose.msra.mxu0 0
        %933 = vmatprep.subr.bf16.mxu0 0
        %934 = vmatpush1.bf16.xpose.msra.mxu0 0
        %935 = vmatprep.subr.bf16.mxu0 0
        %936 = vmatpush1.bf16.xpose.msra.mxu0 0
        %937 = vmatprep.subr.bf16.mxu0 0
        %938 = vmatpush1.bf16.xpose.msra.mxu0 0
        %939 = vmatprep.subr.bf16.mxu0 0
        %940 = vmatpush1.bf16.xpose.msra.mxu0 0
        %941 = vmatprep.subr.bf16.mxu0 0
        %942 = vmatpush1.bf16.xpose.msra.mxu0 0
        %943 = vmatprep.subr.bf16.mxu0 0
        %944 = vmatpush1.bf16.xpose.msra.mxu0 0
        %945 = vmatprep.subr.bf16.mxu0 0
        %946 = vmatpush1.bf16.xpose.msra.mxu0 0
        %947 = vmatprep.subr.bf16.mxu0 0
        %948 = vmatpush1.bf16.xpose.msra.mxu0 0
        %949 = vmatprep.subr.bf16.mxu0 0
        %950 = vmatpush1.bf16.xpose.msra.mxu0 0
        %951 = vmatprep.subr.bf16.mxu0 0
        %952 = vmatpush1.bf16.xpose.msra.mxu0 0
        %953 = vmatprep.subr.bf16.mxu0 0
        %954 = vmatpush1.bf16.xpose.msra.mxu0 0
        %955 = vmatprep.mubr.bf16.mxu0 0
        %956 = vmatmul.mubr.bf16.gmra.mrb[0].mxu0 %v918
        %v957 = vpop.f32.mrb[0].mxu0
        %v958 = vadd.f32 %v582, %v957
        %v959 = vpop.f32.mrb[0].mxu0
        %v960 = vpop.f32.mrb[0].mxu0
        %v961 = vpop.f32.mrb[0].mxu0
        %962 = vdwg.mxu0
        %v963 = vsel %vm584, %v958, -inf
        %964 = vmax.xlane.f32.xlu0 %v963
        %v965 = vpop.xlane.xlu0 %964
        %v966 = vsub.f32 %v958, %v965
        %v967 = vmul.f32 %v966, 1.442695
        %v968 = vpow.pop %v967
        %v969 = vsel %vm584, %v968, 0.0
        %970 = vadd.xlane.f32.xlu0 %v969
        %v971 = vpop.xlane.xlu0 %970
        %v972 = vpack.c.bf16 %v968, %v968
        %973 = vrot.lane.b32.xlu0 %v577, 104
        %v974 = vpop.permute.xlu0 %973
        %v976 = vsel %vm584, %v972, 0
        %v979 = vsel %vm644, %v974, 0
        %981 = vmatprep.subr.bf16.mxu0 0
        %982 = vmatpush1.bf16.msra.mxu0 %v979
        %983 = vmatprep.subr.bf16.mxu0 0
        %984 = vmatpush1.bf16.msra.mxu0 0
        %985 = vmatprep.subr.bf16.mxu0 0
        %986 = vmatpush1.bf16.msra.mxu0 0
        %987 = vmatprep.subr.bf16.mxu0 0
        %988 = vmatpush1.bf16.msra.mxu0 0
        %989 = vmatprep.subr.bf16.mxu0 0
        %990 = vmatpush1.bf16.msra.mxu0 0
        %991 = vmatprep.subr.bf16.mxu0 0
        %992 = vmatpush1.bf16.msra.mxu0 0
        %993 = vmatprep.subr.bf16.mxu0 0
        %994 = vmatpush1.bf16.msra.mxu0 0
        %995 = vmatprep.subr.bf16.mxu0 0
        %996 = vmatpush1.bf16.msra.mxu0 0
        %997 = vmatprep.subr.bf16.mxu0 0
        %998 = vmatpush1.bf16.msra.mxu0 0
        %999 = vmatprep.subr.bf16.mxu0 0
        %1000 = vmatpush1.bf16.msra.mxu0 0
        %1001 = vmatprep.subr.bf16.mxu0 0
        %1002 = vmatpush1.bf16.msra.mxu0 0
        %1003 = vmatprep.subr.bf16.mxu0 0
        %1004 = vmatpush1.bf16.msra.mxu0 0
        %1005 = vmatprep.subr.bf16.mxu0 0
        %1006 = vmatpush1.bf16.msra.mxu0 0
        %1007 = vmatprep.subr.bf16.mxu0 0
        %1008 = vmatpush1.bf16.msra.mxu0 0
        %1009 = vmatprep.subr.bf16.mxu0 0
        %1010 = vmatpush1.bf16.msra.mxu0 0
        %1011 = vmatprep.subr.bf16.mxu0 0
        %1012 = vmatpush1.bf16.msra.mxu0 0
        %1013 = vmatprep.mubr.bf16.mxu0 0
        %1014 = vmatmul.mubr.bf16.gmra.mrb[0].mxu0 %v976
        %v1015 = vpop.f32.mrb[0].mxu0
        %v1016 = vadd.f32 0.0, %v1015
        %v1017 = vpop.f32.mrb[0].mxu0
        %v1018 = vpop.f32.mrb[0].mxu0
        %v1019 = vpop.f32.mrb[0].mxu0
        %1020 = vdwg.mxu0
        %v1021 = vrcp.pop %v971
        %v1022 = vmul.f32 %v1016, %v1021
        %1024 = vrot.lane.b32.xlu0 %v802, 8
        %v1025 = vpop.permute.xlu0 %1024
        %1028 = vrot.lane.b32.xlu0 %v912, 16
        %v1029 = vpop.permute.xlu0 %1028
        %1032 = vrot.lane.b32.xlu0 %v1022, 24
        %v1033 = vpop.permute.xlu0 %1032
        %v1035 = vsel %vm584, %v689, %v1025
        %vm1036 = vcmask 130048
        %v1037 = vsel %vm1036, %v1035, %v1029
        %vm1038 = vcmask 195584
        %v1039 = vsel %vm1038, %v1037, %v1033
        %1040 = vst.msk [vmem:[%s375] sm:$0xff] %vm404, %v1039
        %s1041 = sand.u32 %s213, 1
        %s1042 = scalar_lea.sflag [#allocation4], %s1041
        %s1043 = sand.u32 %s213, 1
        %s1044 = smul.addr %s1043, 8
        %s1045 = scalar_lea.vmem [#allocation10], %s1044
        // Predicated region
        $region69: #{tpu_custom_call.1} parent=51 // pred_check
          %p1046 = pneg %p223
        $region70: #{tpu_custom_call.1} parent=51 // pred_check_branch
          %1048 = sbr.rel (%p1046) target = $region72
        $region71: #{tpu_custom_call.1} parent=51 // pred_region
          %s1050 = ssub.s32 128, 128
          %1051 = vsyncadd %s1042, %s1050
          %s1052 = smul.addr %s27, 128
          %s1053 = scalar_lea.hbm %s8, %s1052
          %s1055 = sshll.u32 %s1045, 4
          %s1056 = int_to_ptr.vmem [resolvable:$true] %s1055
          %1058 = dma.vmem_to_hbm [thread:$0]  %s1056, 128, %s1053, %s1042
        $region72: #{tpu_custom_call.1} parent=51 // pred_fallthru
          _
      $region52: #{tpu_custom_call.1} parent=5 // pred_fallthru
        _
      %p1059 = scmp.le.s32.totalorder 2, %s22
      // Predicated region
      $region73: #{tpu_custom_call.1} parent=5 // pred_check
        %p1060 = pneg %p1059
      $region74: #{tpu_custom_call.1} parent=5 // pred_check_branch
        %1062 = sbr.rel (%p1060) target = $region76
      $region75: #{tpu_custom_call.1} parent=5 // pred_region
        %s1063 = ssub.s32 %s22, 2
        // Predicated region
        $region77: #{tpu_custom_call.1} parent=75 // pred_check
          %p1064 = pneg %p229
        $region78: #{tpu_custom_call.1} parent=75 // pred_check_branch
          %1066 = sbr.rel (%p1064) target = $region80
        $region79: #{tpu_custom_call.1} parent=75 // pred_region
          %s1067 = sand.u32 %s214, 1
          %s1068 = scalar_lea.sflag [#allocation4], %s1067
          %s1069 = sand.u32 %s214, 1
          %s1070 = smul.addr %s1069, 8
          %s1071 = scalar_lea.vmem [#allocation10], %s1070
          %1072 = dma.done %s1068, 128
        $region80: #{tpu_custom_call.1} parent=75 // pred_fallthru
          _
      $region76: #{tpu_custom_call.1} parent=5 // pred_fallthru
        _
    $region6: #{tpu_custom_call.1} parent=1 // loop_footer
      %s26 = sadd.s32 1, %s22
    $region7: #{tpu_custom_call.1} parent=1 // loop_footer_branch
      %21 = sbr.rel target = $region3
    $region8: #{tpu_custom_call.1} parent=1 // loop_exit
      _
    %1073 = vsyncpa [#allocation3], 1
    %s1074 = scalar_lea.sflag [#allocation3], 1
    %1075 = vsyncpa %s1074, 1
    %1076 = vsyncpa [#allocation6], 1
    %1077 = vsyncpa [#allocation9], 1
    %1078 = vsyncpa [#allocation4], 1
    %s1079 = scalar_lea.sflag [#allocation4], 1
    %1080 = vsyncpa %s1079, 1

</llo_original>
